<compile_context>
chip_gen: v5e
topology: v5e:2x2
jax: 0.10.0
libtpu: 0.0.40
codegen_flags: <defaults>
</compile_context>

<pallas_src>
import functools

import jax
import jax.numpy as jnp
from jax.experimental import pallas as pl
from jax.experimental.pallas import tpu as pltpu


HIDDEN = 25       # representation size of the PyTorch module
HP = 32           # sublane-aligned padded hidden / fused-output width


def _round_up(n, m):
    return ((n + m - 1) // m) * m


# ---------------------------------------------------------------------------
# Kernel
# ---------------------------------------------------------------------------
def _bnn_fused_kernel(x_ref, t_ref,
                      w1_ref, b1_ref,
                      w2_ref, b2_ref,
                      w3a_ref, w3b_ref, b3_ref,
                      w4_ref, b4_ref,
                      w5s_ref, b5s_ref,
                      out_ref):
    """One batch tile: (TILE_N, F) x -> (TILE_N, 32) fused [rep | y | 0] slab."""
    x = x_ref[...]                          # (TILE_N, F)
    t = t_ref[...]                          # (TILE_N, 1)

    # pre_treatment: Linear(F,32p) -> ReLU -> Linear(32p,32p) -> ReLU
    h1 = jnp.dot(x, w1_ref[...], preferred_element_type=jnp.float32) + b1_ref[...]
    h1 = jnp.maximum(h1, 0.0)
    rep = jnp.dot(h1, w2_ref[...], preferred_element_type=jnp.float32) + b2_ref[...]
    rep = jnp.maximum(rep, 0.0)             # cols 25..31 are exactly 0

    # post_treatment layer 1, concat folded: concat(rep, t) @ W3 == rep@W3a + t*W3b
    h3 = (jnp.dot(rep, w3a_ref[...], preferred_element_type=jnp.float32)
          + t * w3b_ref[...]                # (TILE_N,1)*(1,32) broadcast
          + b3_ref[...])
    h3 = jnp.maximum(h3, 0.0)

    # post_treatment layer 2
    h4 = jnp.dot(h3, w4_ref[...], preferred_element_type=jnp.float32) + b4_ref[...]
    h4 = jnp.maximum(h4, 0.0)

    # Fused output slab: rep occupies cols 0..24 (cols 25.. are zero), and the
    # final Linear(25, n_out) is pre-shifted so its result lands in cols 25..
    out_ref[...] = (rep
                    + jnp.dot(h4, w5s_ref[...], preferred_element_type=jnp.float32)
                    + b5s_ref[...])


# ---------------------------------------------------------------------------
# Parameter packing (zero-pad to HP=32 and build the fused W5/b5)
# ---------------------------------------------------------------------------
def pack_params(params, hp=HP):
    """Pad PyTorch-shaped params to the 32-wide kernel layout (exact zeros)."""
    H = params["w2"].shape[0]               # 25
    F = params["w1"].shape[0]
    n_out = params["w5"].shape[1]
    assert H + n_out <= hp, "fused slab too narrow for n_outputs"

    def pad2(a, rows, cols):
        return jnp.pad(a, ((0, rows - a.shape[0]), (0, cols - a.shape[1])))

    w3 = params["w3"]                       # (H+1, H): rows 0..H-1 rep, row H is t
    w5s = jnp.zeros((hp, hp), jnp.float32).at[:H, H:H + n_out].set(params["w5"])
    b5s = jnp.zeros((1, hp), jnp.float32).at[:, H:H + n_out].set(params["b5"])

    return (pad2(params["w1"], F, hp), pad2(params["b1"], 1, hp),
            pad2(params["w2"], hp, hp), pad2(params["b2"], 1, hp),
            pad2(w3[:H, :], hp, hp), pad2(w3[H:H + 1, :], 1, hp),
            pad2(params["b3"], 1, hp),
            pad2(params["w4"], hp, hp), pad2(params["b4"], 1, hp),
            w5s, b5s)


# ---------------------------------------------------------------------------
# Wrapper
# ---------------------------------------------------------------------------
@functools.partial(jax.jit, static_argnames=("tile_n",))
def _bnn_forward_padded(x, t, packed, tile_n):
    Np, F = x.shape
    grid = (Np // tile_n,)

    row_spec_x = pl.BlockSpec((tile_n, F), lambda i: (i, 0))
    row_spec_t = pl.BlockSpec((tile_n, 1), lambda i: (i, 0))
    # Weights: full-array blocks, constant index_map -> VMEM-resident.
    w_specs = [pl.BlockSpec(p.shape, lambda i: (0, 0)) for p in packed]
    out_spec = pl.BlockSpec((tile_n, HP), lambda i: (i, 0))

    return pl.pallas_call(
        _bnn_fused_kernel,
        out_shape=jax.ShapeDtypeStruct((Np, HP), jnp.float32),
        grid=grid,
        in_specs=[row_spec_x, row_spec_t] + w_specs,
        out_specs=out_spec,
        compiler_params=pltpu.CompilerParams(
            dimension_semantics=("parallel",)),   # megacore-shardable on v7x
    )(x, t, *packed)


def bnn_forward(x, t, params, tile_n=512):
    """Pallas forward pass. Returns (pre_treatment_rep (N,25), y (N,n_out))."""
    N, _ = x.shape
    H = params["w2"].shape[0]
    n_out = params["w5"].shape[1]

    packed = pack_params(params)

    # Clamp the tile for small batches; keep it sublane-aligned (multiple of 8).
    tile_n = min(int(tile_n), _round_up(max(N, 1), 8))
    Np = _round_up(N, tile_n)
    if Np != N:
        x = jnp.pad(x, ((0, Np - N), (0, 0)))
        t = jnp.pad(t, ((0, Np - N), (0, 0)))

    slab = _bnn_forward_padded(x, t, packed, tile_n)

    rep = slab[:N, :H]
    y = slab[:N, H:H + n_out]
    return rep, y


# ---------------------------------------------------------------------------
# Init + plain-JAX reference (mirrors the PyTorch module)
# ---------------------------------------------------------------------------
def init_params(key, n_features, n_outputs=1, hidden=HIDDEN):
    ks = jax.random.split(key, 10)

    def lin(kw, kb, fan_in, fan_out):
        # PyTorch nn.Linear default init: U(-1/sqrt(fan_in), 1/sqrt(fan_in))
        bound = 1.0 / jnp.sqrt(jnp.float32(fan_in))
        w = jax.random.uniform(kw, (fan_in, fan_out), jnp.float32, -bound, bound)
        b = jax.random.uniform(kb, (1, fan_out), jnp.float32, -bound, bound)
        return w, b

    w1, b1 = lin(ks[0], ks[1], n_features, hidden)      # Linear(F, 25)
    w2, b2 = lin(ks[2], ks[3], hidden, hidden)          # Linear(25, 25)
    w3, b3 = lin(ks[4], ks[5], hidden + 1, hidden)      # Linear(26, 25)
    w4, b4 = lin(ks[6], ks[7], hidden, hidden)          # Linear(25, 25)
    w5, b5 = lin(ks[8], ks[9], hidden, n_outputs)       # Linear(25, n_out)

    return {"w1": w1, "b1": b1, "w2": w2, "b2": b2, "w3": w3, "b3": b3,
            "w4": w4, "b4": b4, "w5": w5, "b5": b5}


def bnn_forward_ref(x, t, params):
    h = jnp.maximum(x @ params["w1"] + params["b1"], 0.0)
    rep = jnp.maximum(h @ params["w2"] + params["b2"], 0.0)
    cat = jnp.concatenate([rep, t], axis=1)
    h3 = jnp.maximum(cat @ params["w3"] + params["b3"], 0.0)
    h4 = jnp.maximum(h3 @ params["w4"] + params["b4"], 0.0)
    y = h4 @ params["w5"] + params["b5"]
    return rep, y


if __name__ == "__main__":
    key = jax.random.PRNGKey(0)
    k_x, k_t, k_p = jax.random.split(key, 3)

    N = 50            # small batch (also exercises the non-multiple-of-8 pad path)
    F = 16            # n_features
    n_outputs = 1

    x = jax.random.normal(k_x, (N, F), dtype=jnp.float32)
    t = (jax.random.uniform(k_t, (N, 1)) > 0.5).astype(jnp.float32)  # treatment flag

    params = init_params(k_p, n_features=F, n_outputs=n_outputs)

    rep, y = bnn_forward(x, t, params)
    jax.block_until_ready(rep)
    jax.block_until_ready(y)

    rep_ref, y_ref = bnn_forward_ref(x, t, params)
    assert rep.shape == (N, HIDDEN) and y.shape == (N, n_outputs)
    assert jnp.allclose(rep, rep_ref, atol=1e-5, rtol=1e-5)
    assert jnp.allclose(y, y_ref, atol=1e-5, rtol=1e-5)

    print("KERNEL_OK")
</pallas_src>

<mosaic_0001>
module attributes {stable_mosaic.version = 11 : i64} {
  func.func @_bnn_fused_kernel(%arg0: i32, %arg1: memref<56x16xf32, #tpu.memory_space<vmem>>, %arg2: memref<56x1xf32, #tpu.memory_space<vmem>>, %arg3: memref<16x32xf32, #tpu.memory_space<vmem>>, %arg4: memref<1x32xf32, #tpu.memory_space<vmem>>, %arg5: memref<32x32xf32, #tpu.memory_space<vmem>>, %arg6: memref<1x32xf32, #tpu.memory_space<vmem>>, %arg7: memref<32x32xf32, #tpu.memory_space<vmem>>, %arg8: memref<1x32xf32, #tpu.memory_space<vmem>>, %arg9: memref<1x32xf32, #tpu.memory_space<vmem>>, %arg10: memref<32x32xf32, #tpu.memory_space<vmem>>, %arg11: memref<1x32xf32, #tpu.memory_space<vmem>>, %arg12: memref<32x32xf32, #tpu.memory_space<vmem>>, %arg13: memref<1x32xf32, #tpu.memory_space<vmem>>, %arg14: memref<56x32xf32, #tpu.memory_space<vmem>>) attributes {dimension_semantics = [#tpu.dimension_semantics<parallel>], iteration_bounds = array<i64: 1>, scalar_prefetch = 0 : i64, scratch_operands = 0 : i64, tpu.core_type = #tpu.core_type<tc>, window_params = [{transform_indices = @transform_0, window_bounds = array<i64: 56, 16>}, {transform_indices = @transform_1, window_bounds = array<i64: 56, 1>}, {pipeline_mode = #tpu.pipeline_mode<synchronous>, transform_indices = @transform_2, window_bounds = array<i64: 16, 32>}, {pipeline_mode = #tpu.pipeline_mode<synchronous>, transform_indices = @transform_3, window_bounds = array<i64: 1, 32>}, {pipeline_mode = #tpu.pipeline_mode<synchronous>, transform_indices = @transform_4, window_bounds = array<i64: 32, 32>}, {pipeline_mode = #tpu.pipeline_mode<synchronous>, transform_indices = @transform_5, window_bounds = array<i64: 1, 32>}, {pipeline_mode = #tpu.pipeline_mode<synchronous>, transform_indices = @transform_6, window_bounds = array<i64: 32, 32>}, {pipeline_mode = #tpu.pipeline_mode<synchronous>, transform_indices = @transform_7, window_bounds = array<i64: 1, 32>}, {pipeline_mode = #tpu.pipeline_mode<synchronous>, transform_indices = @transform_8, window_bounds = array<i64: 1, 32>}, {pipeline_mode = #tpu.pipeline_mode<synchronous>, transform_indices = @transform_9, window_bounds = array<i64: 32, 32>}, {pipeline_mode = #tpu.pipeline_mode<synchronous>, transform_indices = @transform_10, window_bounds = array<i64: 1, 32>}, {pipeline_mode = #tpu.pipeline_mode<synchronous>, transform_indices = @transform_11, window_bounds = array<i64: 32, 32>}, {pipeline_mode = #tpu.pipeline_mode<synchronous>, transform_indices = @transform_12, window_bounds = array<i64: 1, 32>}, {transform_indices = @transform_13, window_bounds = array<i64: 56, 32>}]} {
    %c0 = arith.constant 0 : index
    %c0_0 = arith.constant 0 : index
    %0 = vector.load %arg1[%c0, %c0_0] : memref<56x16xf32, #tpu.memory_space<vmem>>, vector<56x16xf32>
    %c0_1 = arith.constant 0 : index
    %c0_2 = arith.constant 0 : index
    %1 = vector.load %arg2[%c0_1, %c0_2] : memref<56x1xf32, #tpu.memory_space<vmem>>, vector<56x1xf32>
    %c0_3 = arith.constant 0 : index
    %c0_4 = arith.constant 0 : index
    %2 = vector.load %arg3[%c0_3, %c0_4] : memref<16x32xf32, #tpu.memory_space<vmem>>, vector<16x32xf32>
    %cst = arith.constant dense<0.000000e+00> : vector<56x32xf32>
    %3 = tpu.matmul %0, %2, %cst {dimension_numbers = #tpu.dot_dimension_numbers<[1], [0], [0], [1], [0, 0, 1, 1], [], []>} : vector<56x16xf32>, vector<16x32xf32>, vector<56x32xf32> -> vector<56x32xf32>
    %c0_5 = arith.constant 0 : index
    %c0_6 = arith.constant 0 : index
    %4 = vector.load %arg4[%c0_5, %c0_6] : memref<1x32xf32, #tpu.memory_space<vmem>>, vector<1x32xf32>
    %5 = vector.broadcast %4 : vector<1x32xf32> to vector<56x32xf32>
    %6 = arith.addf %3, %5 : vector<56x32xf32>
    %cst_7 = arith.constant 0.000000e+00 : f32
    %7 = vector.broadcast %cst_7 : f32 to vector<56x32xf32>
    %8 = arith.maximumf %6, %7 : vector<56x32xf32>
    %c0_8 = arith.constant 0 : index
    %c0_9 = arith.constant 0 : index
    %9 = vector.load %arg5[%c0_8, %c0_9] : memref<32x32xf32, #tpu.memory_space<vmem>>, vector<32x32xf32>
    %cst_10 = arith.constant dense<0.000000e+00> : vector<56x32xf32>
    %10 = tpu.matmul %8, %9, %cst_10 {dimension_numbers = #tpu.dot_dimension_numbers<[1], [0], [0], [1], [0, 0, 1, 1], [], []>} : vector<56x32xf32>, vector<32x32xf32>, vector<56x32xf32> -> vector<56x32xf32>
    %c0_11 = arith.constant 0 : index
    %c0_12 = arith.constant 0 : index
    %11 = vector.load %arg6[%c0_11, %c0_12] : memref<1x32xf32, #tpu.memory_space<vmem>>, vector<1x32xf32>
    %12 = vector.broadcast %11 : vector<1x32xf32> to vector<56x32xf32>
    %13 = arith.addf %10, %12 : vector<56x32xf32>
    %cst_13 = arith.constant 0.000000e+00 : f32
    %14 = vector.broadcast %cst_13 : f32 to vector<56x32xf32>
    %15 = arith.maximumf %13, %14 : vector<56x32xf32>
    %c0_14 = arith.constant 0 : index
    %c0_15 = arith.constant 0 : index
    %16 = vector.load %arg7[%c0_14, %c0_15] : memref<32x32xf32, #tpu.memory_space<vmem>>, vector<32x32xf32>
    %cst_16 = arith.constant dense<0.000000e+00> : vector<56x32xf32>
    %17 = tpu.matmul %15, %16, %cst_16 {dimension_numbers = #tpu.dot_dimension_numbers<[1], [0], [0], [1], [0, 0, 1, 1], [], []>} : vector<56x32xf32>, vector<32x32xf32>, vector<56x32xf32> -> vector<56x32xf32>
    %c0_17 = arith.constant 0 : index
    %c0_18 = arith.constant 0 : index
    %18 = vector.load %arg8[%c0_17, %c0_18] : memref<1x32xf32, #tpu.memory_space<vmem>>, vector<1x32xf32>
    %19 = vector.broadcast %1 : vector<56x1xf32> to vector<56x32xf32>
    %20 = vector.broadcast %18 : vector<1x32xf32> to vector<56x32xf32>
    %21 = arith.mulf %19, %20 : vector<56x32xf32>
    %22 = arith.addf %17, %21 : vector<56x32xf32>
    %c0_19 = arith.constant 0 : index
    %c0_20 = arith.constant 0 : index
    %23 = vector.load %arg9[%c0_19, %c0_20] : memref<1x32xf32, #tpu.memory_space<vmem>>, vector<1x32xf32>
    %24 = vector.broadcast %23 : vector<1x32xf32> to vector<56x32xf32>
    %25 = arith.addf %22, %24 : vector<56x32xf32>
    %cst_21 = arith.constant 0.000000e+00 : f32
    %26 = vector.broadcast %cst_21 : f32 to vector<56x32xf32>
    %27 = arith.maximumf %25, %26 : vector<56x32xf32>
    %c0_22 = arith.constant 0 : index
    %c0_23 = arith.constant 0 : index
    %28 = vector.load %arg10[%c0_22, %c0_23] : memref<32x32xf32, #tpu.memory_space<vmem>>, vector<32x32xf32>
    %cst_24 = arith.constant dense<0.000000e+00> : vector<56x32xf32>
    %29 = tpu.matmul %27, %28, %cst_24 {dimension_numbers = #tpu.dot_dimension_numbers<[1], [0], [0], [1], [0, 0, 1, 1], [], []>} : vector<56x32xf32>, vector<32x32xf32>, vector<56x32xf32> -> vector<56x32xf32>
    %c0_25 = arith.constant 0 : index
    %c0_26 = arith.constant 0 : index
    %30 = vector.load %arg11[%c0_25, %c0_26] : memref<1x32xf32, #tpu.memory_space<vmem>>, vector<1x32xf32>
    %31 = vector.broadcast %30 : vector<1x32xf32> to vector<56x32xf32>
    %32 = arith.addf %29, %31 : vector<56x32xf32>
    %cst_27 = arith.constant 0.000000e+00 : f32
    %33 = vector.broadcast %cst_27 : f32 to vector<56x32xf32>
    %34 = arith.maximumf %32, %33 : vector<56x32xf32>
    %c0_28 = arith.constant 0 : index
    %c0_29 = arith.constant 0 : index
    %35 = vector.load %arg12[%c0_28, %c0_29] : memref<32x32xf32, #tpu.memory_space<vmem>>, vector<32x32xf32>
    %cst_30 = arith.constant dense<0.000000e+00> : vector<56x32xf32>
    %36 = tpu.matmul %34, %35, %cst_30 {dimension_numbers = #tpu.dot_dimension_numbers<[1], [0], [0], [1], [0, 0, 1, 1], [], []>} : vector<56x32xf32>, vector<32x32xf32>, vector<56x32xf32> -> vector<56x32xf32>
    %37 = arith.addf %15, %36 : vector<56x32xf32>
    %c0_31 = arith.constant 0 : index
    %c0_32 = arith.constant 0 : index
    %38 = vector.load %arg13[%c0_31, %c0_32] : memref<1x32xf32, #tpu.memory_space<vmem>>, vector<1x32xf32>
    %39 = vector.broadcast %38 : vector<1x32xf32> to vector<56x32xf32>
    %40 = arith.addf %37, %39 : vector<56x32xf32>
    %c0_33 = arith.constant 0 : index
    %c0_34 = arith.constant 0 : index
    %41 = vector.load %arg14[%c0_33, %c0_34] : memref<56x32xf32, #tpu.memory_space<vmem>>, vector<56x32xf32>
    tpu.vector_store %arg14[%c0_33, %c0_34], %40 {strides = array<i32>} : memref<56x32xf32, #tpu.memory_space<vmem>>, vector<56x32xf32>,
    return
  }
  func.func @transform_0(%arg0: i32) -> (i32, i32) {
    %c0_i32 = arith.constant 0 : i32
    %c0_i32_0 = arith.constant 0 : i32
    return %arg0, %c0_i32 : i32, i32
  }
  func.func @transform_1(%arg0: i32) -> (i32, i32) {
    %c0_i32 = arith.constant 0 : i32
    %c0_i32_0 = arith.constant 0 : i32
    return %arg0, %c0_i32 : i32, i32
  }
  func.func @transform_2(%arg0: i32) -> (i32, i32) {
    %c0_i32 = arith.constant 0 : i32
    %c0_i32_0 = arith.constant 0 : i32
    %c0_i32_1 = arith.constant 0 : i32
    return %c0_i32, %c0_i32_0 : i32, i32
  }
  func.func @transform_3(%arg0: i32) -> (i32, i32) {
    %c0_i32 = arith.constant 0 : i32
    %c0_i32_0 = arith.constant 0 : i32
    %c0_i32_1 = arith.constant 0 : i32
    return %c0_i32, %c0_i32_0 : i32, i32
  }
  func.func @transform_4(%arg0: i32) -> (i32, i32) {
    %c0_i32 = arith.constant 0 : i32
    %c0_i32_0 = arith.constant 0 : i32
    %c0_i32_1 = arith.constant 0 : i32
    return %c0_i32, %c0_i32_0 : i32, i32
  }
  func.func @transform_5(%arg0: i32) -> (i32, i32) {
    %c0_i32 = arith.constant 0 : i32
    %c0_i32_0 = arith.constant 0 : i32
    %c0_i32_1 = arith.constant 0 : i32
    return %c0_i32, %c0_i32_0 : i32, i32
  }
  func.func @transform_6(%arg0: i32) -> (i32, i32) {
    %c0_i32 = arith.constant 0 : i32
    %c0_i32_0 = arith.constant 0 : i32
    %c0_i32_1 = arith.constant 0 : i32
    return %c0_i32, %c0_i32_0 : i32, i32
  }
  func.func @transform_7(%arg0: i32) -> (i32, i32) {
    %c0_i32 = arith.constant 0 : i32
    %c0_i32_0 = arith.constant 0 : i32
    %c0_i32_1 = arith.constant 0 : i32
    return %c0_i32, %c0_i32_0 : i32, i32
  }
  func.func @transform_8(%arg0: i32) -> (i32, i32) {
    %c0_i32 = arith.constant 0 : i32
    %c0_i32_0 = arith.constant 0 : i32
    %c0_i32_1 = arith.constant 0 : i32
    return %c0_i32, %c0_i32_0 : i32, i32
  }
  func.func @transform_9(%arg0: i32) -> (i32, i32) {
    %c0_i32 = arith.constant 0 : i32
    %c0_i32_0 = arith.constant 0 : i32
    %c0_i32_1 = arith.constant 0 : i32
    return %c0_i32, %c0_i32_0 : i32, i32
  }
  func.func @transform_10(%arg0: i32) -> (i32, i32) {
    %c0_i32 = arith.constant 0 : i32
    %c0_i32_0 = arith.constant 0 : i32
    %c0_i32_1 = arith.constant 0 : i32
    return %c0_i32, %c0_i32_0 : i32, i32
  }
  func.func @transform_11(%arg0: i32) -> (i32, i32) {
    %c0_i32 = arith.constant 0 : i32
    %c0_i32_0 = arith.constant 0 : i32
    %c0_i32_1 = arith.constant 0 : i32
    return %c0_i32, %c0_i32_0 : i32, i32
  }
  func.func @transform_12(%arg0: i32) -> (i32, i32) {
    %c0_i32 = arith.constant 0 : i32
    %c0_i32_0 = arith.constant 0 : i32
    %c0_i32_1 = arith.constant 0 : i32
    return %c0_i32, %c0_i32_0 : i32, i32
  }
  func.func @transform_13(%arg0: i32) -> (i32, i32) {
    %c0_i32 = arith.constant 0 : i32
    %c0_i32_0 = arith.constant 0 : i32
    return %arg0, %c0_i32 : i32, i32
  }
}

</mosaic_0001>

<llo_original>
// kernel: _bnn_forward_padded.1
$region0: #{_bnn_forward_padded.1}
  #allocation0 [shape = 'u32[]', space=smem, size = 0x4, offset = 0x4, fixed_abs, tag = 'smem constant byte address 0x4 - core index']
  #allocation1 [shape = 'u32[72,128]{1,0:T(1,128)}', space=vmem, size = 0x9000, scoped, tag = 'internal scratch']
  %s0 = inlined_call_operand.vmem [shape: f32[56,16], index: 0, kind: input, shape index: {}]
  %s1 = inlined_call_operand.vmem [shape: f32[56,1], index: 1, kind: input, shape index: {}]
  %s2 = inlined_call_operand.hbm [shape: f32[16,32], index: 2, kind: input, shape index: {}]
  %s3 = inlined_call_operand.vmem [shape: f32[1,32], index: 3, kind: input, shape index: {}]
  %s4 = inlined_call_operand.vmem [shape: f32[32,32], index: 4, kind: input, shape index: {}]
  %s5 = inlined_call_operand.vmem [shape: f32[1,32], index: 5, kind: input, shape index: {}]
  %s6 = inlined_call_operand.vmem [shape: f32[32,32], index: 6, kind: input, shape index: {}]
  %s7 = inlined_call_operand.vmem [shape: f32[1,32], index: 7, kind: input, shape index: {}]
  %s8 = inlined_call_operand.vmem [shape: f32[1,32], index: 8, kind: input, shape index: {}]
  %s9 = inlined_call_operand.vmem [shape: f32[32,32], index: 9, kind: input, shape index: {}]
  %s10 = inlined_call_operand.vmem [shape: f32[1,32], index: 10, kind: input, shape index: {}]
  %s11 = inlined_call_operand.vmem [shape: f32[32,32], index: 11, kind: input, shape index: {}]
  %s12 = inlined_call_operand.vmem [shape: f32[1,32], index: 12, kind: input, shape index: {}]
  %s13 = inlined_call_operand.vmem [shape: f32[56,32], index: 13, kind: output, shape index: {}]
  %s14 = sld [smem:[#allocation0]]
  $region66: #{_bnn_forward_padded.1} parent=0
    _
  %s16 = ssub.s32 1, %s14
  %s17 = scalar_select 0, %s16, %s14
  $region1: #{_bnn_forward_padded.1} parent=0
    #allocation2 [shape = 'u8[8192]{0}', space=vmem, size = 0x2000, scoped, tag = 'input window, operand 2, single buffered']
    #allocation3 [shape = 's32[1]{0}', space=sflag, size = 0x4, scoped, tag = 'scoped memory for _bnn_forward_padded.1']
    %18 = vsyncpa [#allocation3], 0
    // Predicated region
    $region2: #{_bnn_forward_padded.1} parent=1 // pred_check
      _
    $region3: #{_bnn_forward_padded.1} parent=1 // pred_check_branch
      %20 = sbr.rel (0) target = $region5
    $region4: #{_bnn_forward_padded.1} parent=1 // pred_region
      _
    $region5: #{_bnn_forward_padded.1} parent=1 // pred_fallthru
      _
    // Predicated region
    $region6: #{_bnn_forward_padded.1} parent=1 // pred_check
      _
    $region7: #{_bnn_forward_padded.1} parent=1 // pred_check_branch
      %22 = sbr.rel (0) target = $region9
    $region8: #{_bnn_forward_padded.1} parent=1 // pred_region
      _
    $region9: #{_bnn_forward_padded.1} parent=1 // pred_fallthru
      _
    // Predicated region
    $region10: #{_bnn_forward_padded.1} parent=1 // pred_check
      _
    $region11: #{_bnn_forward_padded.1} parent=1 // pred_check_branch
      %24 = sbr.rel (0) target = $region13
    $region12: #{_bnn_forward_padded.1} parent=1 // pred_region
      %26 = vsyncadd [#allocation3], 0
      %s27 = sshll.u32 %s2, 4
      %s28 = int_to_ptr.hbm [resolvable:$true] %s27
      %s29 = sshll.u32 [#allocation2], 4
      %s30 = int_to_ptr.vmem [resolvable:$true] %s29
      %35 = dma.hbm_to_vmem [thread:$0]  %s28, 256, %s30, [#allocation3], 128, 128, 8
    $region13: #{_bnn_forward_padded.1} parent=1 // pred_fallthru
      _
    // Predicated region
    $region14: #{_bnn_forward_padded.1} parent=1 // pred_check
      _
    $region15: #{_bnn_forward_padded.1} parent=1 // pred_check_branch
      %37 = sbr.rel (0) target = $region17
    $region16: #{_bnn_forward_padded.1} parent=1 // pred_region
      _
    $region17: #{_bnn_forward_padded.1} parent=1 // pred_fallthru
      _
    // Predicated region
    $region18: #{_bnn_forward_padded.1} parent=1 // pred_check
      _
    $region19: #{_bnn_forward_padded.1} parent=1 // pred_check_branch
      %39 = sbr.rel (0) target = $region21
    $region20: #{_bnn_forward_padded.1} parent=1 // pred_region
      _
    $region21: #{_bnn_forward_padded.1} parent=1 // pred_fallthru
      _
    // Predicated region
    $region22: #{_bnn_forward_padded.1} parent=1 // pred_check
      _
    $region23: #{_bnn_forward_padded.1} parent=1 // pred_check_branch
      %41 = sbr.rel (0) target = $region25
    $region24: #{_bnn_forward_padded.1} parent=1 // pred_region
      _
    $region25: #{_bnn_forward_padded.1} parent=1 // pred_fallthru
      _
    // Predicated region
    $region26: #{_bnn_forward_padded.1} parent=1 // pred_check
      _
    $region27: #{_bnn_forward_padded.1} parent=1 // pred_check_branch
      %43 = sbr.rel (0) target = $region29
    $region28: #{_bnn_forward_padded.1} parent=1 // pred_region
      _
    $region29: #{_bnn_forward_padded.1} parent=1 // pred_fallthru
      _
    // Predicated region
    $region30: #{_bnn_forward_padded.1} parent=1 // pred_check
      _
    $region31: #{_bnn_forward_padded.1} parent=1 // pred_check_branch
      %45 = sbr.rel (0) target = $region33
    $region32: #{_bnn_forward_padded.1} parent=1 // pred_region
      _
    $region33: #{_bnn_forward_padded.1} parent=1 // pred_fallthru
      _
    // Predicated region
    $region34: #{_bnn_forward_padded.1} parent=1 // pred_check
      _
    $region35: #{_bnn_forward_padded.1} parent=1 // pred_check_branch
      %47 = sbr.rel (0) target = $region37
    $region36: #{_bnn_forward_padded.1} parent=1 // pred_region
      _
    $region37: #{_bnn_forward_padded.1} parent=1 // pred_fallthru
      _
    // Predicated region
    $region38: #{_bnn_forward_padded.1} parent=1 // pred_check
      _
    $region39: #{_bnn_forward_padded.1} parent=1 // pred_check_branch
      %49 = sbr.rel (0) target = $region41
    $region40: #{_bnn_forward_padded.1} parent=1 // pred_region
      _
    $region41: #{_bnn_forward_padded.1} parent=1 // pred_fallthru
      _
    // Predicated region
    $region42: #{_bnn_forward_padded.1} parent=1 // pred_check
      _
    $region43: #{_bnn_forward_padded.1} parent=1 // pred_check_branch
      %51 = sbr.rel (0) target = $region45
    $region44: #{_bnn_forward_padded.1} parent=1 // pred_region
      _
    $region45: #{_bnn_forward_padded.1} parent=1 // pred_fallthru
      _
    // Predicated region
    $region46: #{_bnn_forward_padded.1} parent=1 // pred_check
      _
    $region47: #{_bnn_forward_padded.1} parent=1 // pred_check_branch
      %53 = sbr.rel (0) target = $region49
    $region48: #{_bnn_forward_padded.1} parent=1 // pred_region
      _
    $region49: #{_bnn_forward_padded.1} parent=1 // pred_fallthru
      _
    // Predicated region
    $region50: #{_bnn_forward_padded.1} parent=1 // pred_check
      _
    $region51: #{_bnn_forward_padded.1} parent=1 // pred_check_branch
      %55 = sbr.rel (0) target = $region53
    $region52: #{_bnn_forward_padded.1} parent=1 // pred_region
      _
    $region53: #{_bnn_forward_padded.1} parent=1 // pred_fallthru
      _
    // Predicated region
    $region54: #{_bnn_forward_padded.1} parent=1 // pred_check
      _
    $region55: #{_bnn_forward_padded.1} parent=1 // pred_check_branch
      %57 = sbr.rel (0) target = $region57
    $region56: #{_bnn_forward_padded.1} parent=1 // pred_region
      %59 = dma.done [#allocation3], 256
    $region57: #{_bnn_forward_padded.1} parent=1 // pred_fallthru
      _
    %v60 = vld [vmem:[%s0] sm:$0xff]
    %v61 = vld [vmem:[%s0 + $0x8] sm:$0xff]
    %v62 = vld [vmem:[%s0 + $0x10] sm:$0xff]
    %v63 = vld [vmem:[%s0 + $0x18] sm:$0xff]
    %v64 = vld [vmem:[%s0 + $0x20] sm:$0xff]
    %v65 = vld [vmem:[%s0 + $0x28] sm:$0xff]
    %v66 = vld [vmem:[%s0 + $0x30] sm:$0xff]
    %v67 = vld [vmem:[%s1] sm:$0xff]
    %v68 = vld [vmem:[%s1 + $0x8] sm:$0xff]
    %v69 = vld [vmem:[%s1 + $0x10] sm:$0xff]
    %v70 = vld [vmem:[%s1 + $0x18] sm:$0xff]
    %v71 = vld [vmem:[%s1 + $0x20] sm:$0xff]
    %v72 = vld [vmem:[%s1 + $0x28] sm:$0xff]
    %v73 = vld [vmem:[%s1 + $0x30] sm:$0xff]
    %v74 = vld [vmem:[#allocation2] sm:$0xff]
    %v75 = vld [vmem:[#allocation2 + $0x8] sm:$0xff]
    %v76 = vld [vmem:[%s3] sm:$0x1]
    %v78 = vperm.slane %v76, 0
    %vm80 = vcmask 130048
    %v82 = vsel %vm80, %v60, 0
    %v85 = vsel %vm80, %v61, 0
    %v88 = vsel %vm80, %v62, 0
    %v91 = vsel %vm80, %v63, 0
    %v94 = vsel %vm80, %v64, 0
    %v97 = vsel %vm80, %v65, 0
    %v100 = vsel %vm80, %v66, 0
    %102 = vmatpush.msra.mxu0 0.0
    %103 = vmatpush.msra.mxu0 0.0
    %104 = vmatpush.msra.mxu0 0.0
    %105 = vmatpush.msra.mxu0 0.0
    %106 = vmatpush.msra.mxu0 0.0
    %107 = vmatpush.msra.mxu0 0.0
    %108 = vmatpush.msra.mxu0 0.0
    %109 = vmatpush.msra.mxu0 0.0
    %110 = vmatpush.msra.mxu0 0.0
    %111 = vmatpush.msra.mxu0 0.0
    %112 = vmatpush.msra.mxu0 0.0
    %113 = vmatpush.msra.mxu0 0.0
    %114 = vmatpush.msra.mxu0 0.0
    %115 = vmatpush.msra.mxu0 0.0
    %116 = vmatpush.msra.mxu0 %v75
    %117 = vmatpush.msra.mxu0 %v74
    %118 = vmatmul.f32.gmra.mxu0 %v82
    %v119 = vpop.f32.mrf.mxu0
    %v120 = vadd.f32 %v78, %v119
    %121 = vmatmul.f32.gmra.mxu0 %v85
    %v122 = vpop.f32.mrf.mxu0
    %v123 = vadd.f32 %v78, %v122
    %124 = vmatmul.f32.gmra.mxu0 %v88
    %v125 = vpop.f32.mrf.mxu0
    %v126 = vadd.f32 %v78, %v125
    %127 = vmatmul.f32.gmra.mxu0 %v91
    %v128 = vpop.f32.mrf.mxu0
    %v129 = vadd.f32 %v78, %v128
    %130 = vmatmul.f32.gmra.mxu0 %v94
    %v131 = vpop.f32.mrf.mxu0
    %v132 = vadd.f32 %v78, %v131
    %133 = vmatmul.f32.gmra.mxu0 %v97
    %v134 = vpop.f32.mrf.mxu0
    %v135 = vadd.f32 %v78, %v134
    %136 = vmatmul.f32.gmra.mxu0 %v100
    %v137 = vpop.f32.mrf.mxu0
    %v138 = vadd.f32 %v78, %v137
    %139 = vdwg.mxu0
    %v140 = vmax.f32 %v120, 0.0
    %v141 = vmax.f32 %v123, 0.0
    %v142 = vmax.f32 %v126, 0.0
    %v143 = vmax.f32 %v129, 0.0
    %v144 = vmax.f32 %v132, 0.0
    %v145 = vmax.f32 %v135, 0.0
    %v146 = vmax.f32 %v138, 0.0
    %v147 = vld [vmem:[%s4] sm:$0xff]
    %v148 = vld [vmem:[%s4 + $0x8] sm:$0xff]
    %v149 = vld [vmem:[%s4 + $0x10] sm:$0xff]
    %v150 = vld [vmem:[%s4 + $0x18] sm:$0xff]
    %v151 = vld [vmem:[%s5] sm:$0x1]
    %v153 = vperm.slane %v151, 0
    %vm155 = vcmask 261120
    %v157 = vsel %vm155, %v140, 0
    %v160 = vsel %vm155, %v141, 0
    %v163 = vsel %vm155, %v142, 0
    %v166 = vsel %vm155, %v143, 0
    %v169 = vsel %vm155, %v144, 0
    %v172 = vsel %vm155, %v145, 0
    %v175 = vsel %vm155, %v146, 0
    %177 = vmatpush.msra.mxu0 0.0
    %178 = vmatpush.msra.mxu0 0.0
    %179 = vmatpush.msra.mxu0 0.0
    %180 = vmatpush.msra.mxu0 0.0
    %181 = vmatpush.msra.mxu0 0.0
    %182 = vmatpush.msra.mxu0 0.0
    %183 = vmatpush.msra.mxu0 0.0
    %184 = vmatpush.msra.mxu0 0.0
    %185 = vmatpush.msra.mxu0 0.0
    %186 = vmatpush.msra.mxu0 0.0
    %187 = vmatpush.msra.mxu0 0.0
    %188 = vmatpush.msra.mxu0 0.0
    %189 = vmatpush.msra.mxu0 %v150
    %190 = vmatpush.msra.mxu0 %v149
    %191 = vmatpush.msra.mxu0 %v148
    %192 = vmatpush.msra.mxu0 %v147
    %193 = vmatmul.f32.gmra.mxu0 %v157
    %v194 = vpop.f32.mrf.mxu0
    %v195 = vadd.f32 %v153, %v194
    %196 = vmatmul.f32.gmra.mxu0 %v160
    %v197 = vpop.f32.mrf.mxu0
    %v198 = vadd.f32 %v153, %v197
    %199 = vmatmul.f32.gmra.mxu0 %v163
    %v200 = vpop.f32.mrf.mxu0
    %v201 = vadd.f32 %v153, %v200
    %202 = vmatmul.f32.gmra.mxu0 %v166
    %v203 = vpop.f32.mrf.mxu0
    %v204 = vadd.f32 %v153, %v203
    %205 = vmatmul.f32.gmra.mxu0 %v169
    %v206 = vpop.f32.mrf.mxu0
    %v207 = vadd.f32 %v153, %v206
    %208 = vmatmul.f32.gmra.mxu0 %v172
    %v209 = vpop.f32.mrf.mxu0
    %v210 = vadd.f32 %v153, %v209
    %211 = vmatmul.f32.gmra.mxu0 %v175
    %v212 = vpop.f32.mrf.mxu0
    %v213 = vadd.f32 %v153, %v212
    %214 = vdwg.mxu0
    %v215 = vmax.f32 %v195, 0.0
    %v216 = vmax.f32 %v198, 0.0
    %v217 = vmax.f32 %v201, 0.0
    %v218 = vmax.f32 %v204, 0.0
    %v219 = vmax.f32 %v207, 0.0
    %v220 = vmax.f32 %v210, 0.0
    %v221 = vmax.f32 %v213, 0.0
    %v222 = vld [vmem:[%s6] sm:$0xff]
    %v223 = vld [vmem:[%s6 + $0x8] sm:$0xff]
    %v224 = vld [vmem:[%s6 + $0x10] sm:$0xff]
    %v225 = vld [vmem:[%s6 + $0x18] sm:$0xff]
    %v226 = vld [vmem:[%s7] sm:$0x1]
    %228 = vset.pattern.permute.xlu0 0
    %229 = vperm.xlu0 %228, %v67
    %v230 = vpop.permute.xlu0 %229
    %233 = vset.pattern.permute.xlu0 0
    %234 = vperm.xlu0 %233, %v68
    %v235 = vpop.permute.xlu0 %234
    %238 = vset.pattern.permute.xlu0 0
    %239 = vperm.xlu0 %238, %v69
    %v240 = vpop.permute.xlu0 %239
    %243 = vset.pattern.permute.xlu0 0
    %244 = vperm.xlu0 %243, %v70
    %v245 = vpop.permute.xlu0 %244
    %248 = vset.pattern.permute.xlu0 0
    %249 = vperm.xlu0 %248, %v71
    %v250 = vpop.permute.xlu0 %249
    %253 = vset.pattern.permute.xlu0 0
    %254 = vperm.xlu0 %253, %v72
    %v255 = vpop.permute.xlu0 %254
    %258 = vset.pattern.permute.xlu0 0
    %259 = vperm.xlu0 %258, %v73
    %v260 = vpop.permute.xlu0 %259
    %v263 = vperm.slane %v226, 0
    %v265 = vmul.f32 %v230, %v263
    %v266 = vmul.f32 %v235, %v263
    %v267 = vmul.f32 %v240, %v263
    %v268 = vmul.f32 %v245, %v263
    %v269 = vmul.f32 %v250, %v263
    %v270 = vmul.f32 %v255, %v263
    %v271 = vmul.f32 %v260, %v263
    %v273 = vsel %vm155, %v215, 0
    %v276 = vsel %vm155, %v216, 0
    %v279 = vsel %vm155, %v217, 0
    %v282 = vsel %vm155, %v218, 0
    %v285 = vsel %vm155, %v219, 0
    %v288 = vsel %vm155, %v220, 0
    %v291 = vsel %vm155, %v221, 0
    %293 = vmatpush.msra.mxu0 0.0
    %294 = vmatpush.msra.mxu0 0.0
    %295 = vmatpush.msra.mxu0 0.0
    %296 = vmatpush.msra.mxu0 0.0
    %297 = vmatpush.msra.mxu0 0.0
    %298 = vmatpush.msra.mxu0 0.0
    %299 = vmatpush.msra.mxu0 0.0
    %300 = vmatpush.msra.mxu0 0.0
    %301 = vmatpush.msra.mxu0 0.0
    %302 = vmatpush.msra.mxu0 0.0
    %303 = vmatpush.msra.mxu0 0.0
    %304 = vmatpush.msra.mxu0 0.0
    %305 = vmatpush.msra.mxu0 %v225
    %306 = vmatpush.msra.mxu0 %v224
    %307 = vmatpush.msra.mxu0 %v223
    %308 = vmatpush.msra.mxu0 %v222
    %309 = vmatmul.f32.gmra.mxu0 %v273
    %v310 = vpop.f32.mrf.mxu0
    %v311 = vadd.f32 %v265, %v310
    %312 = vmatmul.f32.gmra.mxu0 %v276
    %v313 = vpop.f32.mrf.mxu0
    %v314 = vadd.f32 %v266, %v313
    %315 = vmatmul.f32.gmra.mxu0 %v279
    %v316 = vpop.f32.mrf.mxu0
    %v317 = vadd.f32 %v267, %v316
    %318 = vmatmul.f32.gmra.mxu0 %v282
    %v319 = vpop.f32.mrf.mxu0
    %v320 = vadd.f32 %v268, %v319
    %321 = vmatmul.f32.gmra.mxu0 %v285
    %v322 = vpop.f32.mrf.mxu0
    %v323 = vadd.f32 %v269, %v322
    %324 = vmatmul.f32.gmra.mxu0 %v288
    %v325 = vpop.f32.mrf.mxu0
    %v326 = vadd.f32 %v270, %v325
    %327 = vmatmul.f32.gmra.mxu0 %v291
    %v328 = vpop.f32.mrf.mxu0
    %v329 = vadd.f32 %v271, %v328
    %330 = vdwg.mxu0
    %v331 = vld [vmem:[%s8] sm:$0x1]
    %v333 = vperm.slane %v331, 0
    %v335 = vadd.f32 %v311, %v333
    %v336 = vadd.f32 %v314, %v333
    %v337 = vadd.f32 %v317, %v333
    %v338 = vadd.f32 %v320, %v333
    %v339 = vadd.f32 %v323, %v333
    %v340 = vadd.f32 %v326, %v333
    %v341 = vadd.f32 %v329, %v333
    %v342 = vmax.f32 %v335, 0.0
    %v343 = vmax.f32 %v336, 0.0
    %v344 = vmax.f32 %v337, 0.0
    %v345 = vmax.f32 %v338, 0.0
    %v346 = vmax.f32 %v339, 0.0
    %v347 = vmax.f32 %v340, 0.0
    %v348 = vmax.f32 %v341, 0.0
    %v349 = vld [vmem:[%s9] sm:$0xff]
    %v350 = vld [vmem:[%s9 + $0x8] sm:$0xff]
    %v351 = vld [vmem:[%s9 + $0x10] sm:$0xff]
    %v352 = vld [vmem:[%s9 + $0x18] sm:$0xff]
    %v353 = vld [vmem:[%s10] sm:$0x1]
    %v355 = vperm.slane %v353, 0
    %v358 = vsel %vm155, %v342, 0
    %v361 = vsel %vm155, %v343, 0
    %v364 = vsel %vm155, %v344, 0
    %v367 = vsel %vm155, %v345, 0
    %v370 = vsel %vm155, %v346, 0
    %v373 = vsel %vm155, %v347, 0
    %v376 = vsel %vm155, %v348, 0
    %378 = vmatpush.msra.mxu0 0.0
    %379 = vmatpush.msra.mxu0 0.0
    %380 = vmatpush.msra.mxu0 0.0
    %381 = vmatpush.msra.mxu0 0.0
    %382 = vmatpush.msra.mxu0 0.0
    %383 = vmatpush.msra.mxu0 0.0
    %384 = vmatpush.msra.mxu0 0.0
    %385 = vmatpush.msra.mxu0 0.0
    %386 = vmatpush.msra.mxu0 0.0
    %387 = vmatpush.msra.mxu0 0.0
    %388 = vmatpush.msra.mxu0 0.0
    %389 = vmatpush.msra.mxu0 0.0
    %390 = vmatpush.msra.mxu0 %v352
    %391 = vmatpush.msra.mxu0 %v351
    %392 = vmatpush.msra.mxu0 %v350
    %393 = vmatpush.msra.mxu0 %v349
    %394 = vmatmul.f32.gmra.mxu0 %v358
    %v395 = vpop.f32.mrf.mxu0
    %v396 = vadd.f32 %v355, %v395
    %397 = vmatmul.f32.gmra.mxu0 %v361
    %v398 = vpop.f32.mrf.mxu0
    %v399 = vadd.f32 %v355, %v398
    %400 = vmatmul.f32.gmra.mxu0 %v364
    %v401 = vpop.f32.mrf.mxu0
    %v402 = vadd.f32 %v355, %v401
    %403 = vmatmul.f32.gmra.mxu0 %v367
    %v404 = vpop.f32.mrf.mxu0
    %v405 = vadd.f32 %v355, %v404
    %406 = vmatmul.f32.gmra.mxu0 %v370
    %v407 = vpop.f32.mrf.mxu0
    %v408 = vadd.f32 %v355, %v407
    %409 = vmatmul.f32.gmra.mxu0 %v373
    %v410 = vpop.f32.mrf.mxu0
    %v411 = vadd.f32 %v355, %v410
    %412 = vmatmul.f32.gmra.mxu0 %v376
    %v413 = vpop.f32.mrf.mxu0
    %v414 = vadd.f32 %v355, %v413
    %415 = vdwg.mxu0
    %v416 = vmax.f32 %v396, 0.0
    %v417 = vmax.f32 %v399, 0.0
    %v418 = vmax.f32 %v402, 0.0
    %v419 = vmax.f32 %v405, 0.0
    %v420 = vmax.f32 %v408, 0.0
    %v421 = vmax.f32 %v411, 0.0
    %v422 = vmax.f32 %v414, 0.0
    %v423 = vld [vmem:[%s11] sm:$0xff]
    %v424 = vld [vmem:[%s11 + $0x8] sm:$0xff]
    %v425 = vld [vmem:[%s11 + $0x10] sm:$0xff]
    %v426 = vld [vmem:[%s11 + $0x18] sm:$0xff]
    %v428 = vsel %vm155, %v416, 0
    %v431 = vsel %vm155, %v417, 0
    %v434 = vsel %vm155, %v418, 0
    %v437 = vsel %vm155, %v419, 0
    %v440 = vsel %vm155, %v420, 0
    %v443 = vsel %vm155, %v421, 0
    %v446 = vsel %vm155, %v422, 0
    %448 = vmatpush.msra.mxu0 0.0
    %449 = vmatpush.msra.mxu0 0.0
    %450 = vmatpush.msra.mxu0 0.0
    %451 = vmatpush.msra.mxu0 0.0
    %452 = vmatpush.msra.mxu0 0.0
    %453 = vmatpush.msra.mxu0 0.0
    %454 = vmatpush.msra.mxu0 0.0
    %455 = vmatpush.msra.mxu0 0.0
    %456 = vmatpush.msra.mxu0 0.0
    %457 = vmatpush.msra.mxu0 0.0
    %458 = vmatpush.msra.mxu0 0.0
    %459 = vmatpush.msra.mxu0 0.0
    %460 = vmatpush.msra.mxu0 %v426
    %461 = vmatpush.msra.mxu0 %v425
    %462 = vmatpush.msra.mxu0 %v424
    %463 = vmatpush.msra.mxu0 %v423
    %464 = vmatmul.f32.gmra.mxu0 %v428
    %v465 = vpop.f32.mrf.mxu0
    %v466 = vadd.f32 0.0, %v465
    %467 = vmatmul.f32.gmra.mxu0 %v431
    %v468 = vpop.f32.mrf.mxu0
    %v469 = vadd.f32 0.0, %v468
    %470 = vmatmul.f32.gmra.mxu0 %v434
    %v471 = vpop.f32.mrf.mxu0
    %v472 = vadd.f32 0.0, %v471
    %473 = vmatmul.f32.gmra.mxu0 %v437
    %v474 = vpop.f32.mrf.mxu0
    %v475 = vadd.f32 0.0, %v474
    %476 = vmatmul.f32.gmra.mxu0 %v440
    %v477 = vpop.f32.mrf.mxu0
    %v478 = vadd.f32 0.0, %v477
    %479 = vmatmul.f32.gmra.mxu0 %v443
    %v480 = vpop.f32.mrf.mxu0
    %v481 = vadd.f32 0.0, %v480
    %482 = vmatmul.f32.gmra.mxu0 %v446
    %v483 = vpop.f32.mrf.mxu0
    %v484 = vadd.f32 0.0, %v483
    %485 = vdwg.mxu0
    %v486 = vadd.f32 %v215, %v466
    %v487 = vadd.f32 %v216, %v469
    %v488 = vadd.f32 %v217, %v472
    %v489 = vadd.f32 %v218, %v475
    %v490 = vadd.f32 %v219, %v478
    %v491 = vadd.f32 %v220, %v481
    %v492 = vadd.f32 %v221, %v484
    %v493 = vld [vmem:[%s12] sm:$0x1]
    %v495 = vperm.slane %v493, 0
    %v497 = vadd.f32 %v486, %v495
    %v498 = vadd.f32 %v487, %v495
    %v499 = vadd.f32 %v488, %v495
    %v500 = vadd.f32 %v489, %v495
    %v501 = vadd.f32 %v490, %v495
    %v502 = vadd.f32 %v491, %v495
    %v503 = vadd.f32 %v492, %v495
    %504 = vst.msk [vmem:[%s13] sm:$0xff] %vm155, %v497
    %505 = vst.msk [vmem:[%s13 + $0x8] sm:$0xff] %vm155, %v498
    %506 = vst.msk [vmem:[%s13 + $0x10] sm:$0xff] %vm155, %v499
    %507 = vst.msk [vmem:[%s13 + $0x18] sm:$0xff] %vm155, %v500
    %508 = vst.msk [vmem:[%s13 + $0x20] sm:$0xff] %vm155, %v501
    %509 = vst.msk [vmem:[%s13 + $0x28] sm:$0xff] %vm155, %v502
    %510 = vst.msk [vmem:[%s13 + $0x30] sm:$0xff] %vm155, %v503
    // Predicated region
    $region58: #{_bnn_forward_padded.1} parent=1 // pred_check
      _
    $region59: #{_bnn_forward_padded.1} parent=1 // pred_check_branch
      %512 = sbr.rel (0) target = $region61
    $region60: #{_bnn_forward_padded.1} parent=1 // pred_region
      _
    $region61: #{_bnn_forward_padded.1} parent=1 // pred_fallthru
      _
    // Predicated region
    $region62: #{_bnn_forward_padded.1} parent=1 // pred_check
      _
    $region63: #{_bnn_forward_padded.1} parent=1 // pred_check_branch
      %514 = sbr.rel (0) target = $region65
    $region64: #{_bnn_forward_padded.1} parent=1 // pred_region
      _
    $region65: #{_bnn_forward_padded.1} parent=1 // pred_fallthru
      _
    %515 = vsyncpa [#allocation3], 1

</llo_original>
